<compile_context>
chip_gen: v5e
topology: v5e:2x2
jax: 0.10.0
libtpu: 0.0.40
codegen_flags: <defaults>
</compile_context>

<pallas_src>
import math

import jax
import jax.numpy as jnp
from jax.experimental import pallas as pl
from jax.experimental.pallas import tpu as pltpu


_LANE = 128


# ----------------------------------------------------------------------------
# DCT matrix (mirror of torchaudio.functional.create_dct)
# ----------------------------------------------------------------------------
def create_dct(n_mfcc, n_mels, norm="ortho", dtype=jnp.float32):
    n = jnp.arange(n_mels, dtype=jnp.float32)
    k = jnp.arange(n_mfcc, dtype=jnp.float32)[:, None]
    dct = jnp.cos(math.pi / float(n_mels) * (n + 0.5) * k)      # (n_mfcc, n_mels)
    if norm is None:
        dct = dct * 2.0
    else:  # 'ortho'
        dct = dct.at[0].multiply(1.0 / math.sqrt(2.0))
        dct = dct * math.sqrt(2.0 / float(n_mels))
    return dct.T.astype(dtype)                                   # (n_mels, n_mfcc)


# ----------------------------------------------------------------------------
# Pallas kernel
# ----------------------------------------------------------------------------
def _mfcc_kernel(dct_ref, x_ref, o_ref):
    # dct_ref: (bB, n_mfcc, n_mels)  DCT^T replicated over the batch tile;
    #          constant block index -> fetched once, VMEM-resident.
    # x_ref:   (bB, n_mels, tT)      mel tile, time on the lane axis.
    # o_ref:   (bB, n_mfcc, tT)
    o_ref[...] = jnp.einsum(
        "bkm,bmt->bkt",
        dct_ref[...],
        x_ref[...],
        preferred_element_type=jnp.float32,
    ).astype(o_ref.dtype)


# ----------------------------------------------------------------------------
# Tiling
# ----------------------------------------------------------------------------
def _round_up(x, m):
    return -(-x // m) * m


def _choose_tiles(B, n_mels, n_mfcc, T, itemsize):
    """Pick (bB, tT, T_pad): big lane-dense blocks within a VMEM budget."""
    budget = 12 << 20  # fits v5e's ~16 MiB default scoped VMEM with headroom
    T128 = _round_up(T, _LANE)

    # Large lane-dense time tile (multiple of 128), capped by the padded length.
    tT = min(T128, 4096)
    row_bytes = (n_mels + n_mfcc) * itemsize

    def footprint(bB_, tT_):
        # double-buffered in + out tiles, plus the resident replicated DCT
        return 2 * bB_ * tT_ * row_bytes + bB_ * n_mfcc * n_mels * itemsize

    while tT > _LANE and footprint(1, tT) > budget:
        tT = max(_LANE, (tT // 2 // _LANE) * _LANE)

    # Batch tile: largest divisor of B (<= 8) that still fits the budget.
    bB = 1
    for cand in range(min(B, 8), 0, -1):
        if B % cand == 0 and footprint(cand, tT) <= budget:
            bB = cand
            break

    def grid_steps(bB_, tT_):
        return (B // bB_) * (_round_up(T, tT_) // tT_)

    # Keep >= 2 parallel grid steps when the work can be split (v7x has 2 TCs).
    while grid_steps(bB, tT) < 2:
        if bB > 1:
            bB = next(d for d in range(bB - 1, 0, -1) if B % d == 0)
        elif tT > _LANE and T128 > _LANE:
            tT = max(_LANE, (tT // 2 // _LANE) * _LANE)
        else:
            break

    T_pad = _round_up(T, tT)
    return bB, tT, T_pad


# ----------------------------------------------------------------------------
# Wrapper
# ----------------------------------------------------------------------------
def mfcc_pallas(mel_specgram, dct_mat):
    """mel_specgram: (B, n_mels, T) or (n_mels, T).  dct_mat: (n_mels, n_mfcc)."""
    squeeze = mel_specgram.ndim == 2
    if squeeze:
        mel_specgram = mel_specgram[None]

    B, n_mels, T = mel_specgram.shape
    n_mels_d, n_mfcc = dct_mat.shape
    assert n_mels_d == n_mels, "dct_mat / mel_specgram n_mels mismatch"
    dtype = mel_specgram.dtype
    itemsize = jnp.dtype(dtype).itemsize

    bB, tT, T_pad = _choose_tiles(B, n_mels, n_mfcc, T, itemsize)

    x = mel_specgram
    if T_pad != T:
        # Zero-pad the time axis so every block is full and every store is
        # lane-dense; padded columns are sliced off below.
        x = jnp.pad(x, ((0, 0), (0, 0), (0, T_pad - T)))

    # (bB, n_mfcc, n_mels): DCT^T replicated across the batch tile so the
    # kernel does one batched dot_general per step.
    dct_t = jnp.broadcast_to(
        dct_mat.T.astype(dtype)[None], (bB, n_mfcc, n_mels)
    )

    grid = (B // bB, T_pad // tT)

    cost = pl.CostEstimate(
        flops=2 * B * n_mfcc * n_mels * T_pad,
        transcendentals=0,
        bytes_accessed=(B * n_mels * T_pad + B * n_mfcc * T_pad
                        + bB * n_mfcc * n_mels) * itemsize,
    )

    out = pl.pallas_call(
        _mfcc_kernel,
        out_shape=jax.ShapeDtypeStruct((B, n_mfcc, T_pad), dtype),
        grid=grid,
        in_specs=[
            pl.BlockSpec((bB, n_mfcc, n_mels), lambda b, t: (0, 0, 0)),
            pl.BlockSpec((bB, n_mels, tT), lambda b, t: (b, 0, t)),
        ],
        out_specs=pl.BlockSpec((bB, n_mfcc, tT), lambda b, t: (b, 0, t)),
        compiler_params=pltpu.CompilerParams(
            dimension_semantics=("parallel", "parallel")
        ),
        cost_estimate=cost,
    )(dct_t, x)

    if T_pad != T:
        out = out[:, :, :T]
    if squeeze:
        out = out[0]
    return out


# ----------------------------------------------------------------------------
# Module mirror
# ----------------------------------------------------------------------------
class MFCC:
    """JAX/Pallas mirror of the PyTorch MFCC module (DCT over mel bins).

    Note: as in the PyTorch spec, the forward applies only the DCT matmul —
    the input is expected to already be a (log-)mel spectrogram.
    """

    def __init__(self, n_mfcc=40, n_mels=80, dtype=jnp.float32):
        self.n_mfcc = n_mfcc
        self.n_mels = n_mels
        self.norm = "ortho"
        self.dct_mat = create_dct(n_mfcc, n_mels, self.norm, dtype)  # (n_mels, n_mfcc)

    def __call__(self, mel_specgram):
        return mfcc_pallas(mel_specgram, self.dct_mat)


# ----------------------------------------------------------------------------
# Plain-JAX reference of the torch forward
# ----------------------------------------------------------------------------
def _reference(mel, dct_mat):
    unsqueezed = mel.ndim == 2
    if unsqueezed:
        mel = mel[None]
    out = jnp.swapaxes(jnp.matmul(jnp.swapaxes(mel, 1, 2), dct_mat), 1, 2)
    if unsqueezed:
        out = out[0]
    return out


if __name__ == "__main__":
    key = jax.random.PRNGKey(0)
    B, n_mels, T = 2, 80, 16
    n_mfcc = 40

    x = jax.random.normal(key, (B, n_mels, T), dtype=jnp.float32)

    mod = MFCC(n_mfcc=n_mfcc, n_mels=n_mels)

    # 3-D (batched) path
    out = jax.block_until_ready(mod(x))
    want = _reference(x, mod.dct_mat)

    # 2-D (unsqueeze/squeeze) path
    out2 = jax.block_until_ready(mod(x[0]))
    want2 = _reference(x[0], mod.dct_mat)

    ok = (
        out.shape == (B, n_mfcc, T)
        and out2.shape == (n_mfcc, T)
        and jnp.allclose(out, want, atol=1e-5, rtol=1e-5)
        and jnp.allclose(out2, want2, atol=1e-5, rtol=1e-5)
    )
    if ok:
        print("KERNEL_OK")
</pallas_src>

<mosaic_0001>
module attributes {stable_mosaic.version = 11 : i64} {
  func.func @_mfcc_kernel(%arg0: i32, %arg1: i32, %arg2: memref<1x40x80xf32, #tpu.memory_space<vmem>>, %arg3: memref<1x80x128xf32, #tpu.memory_space<vmem>>, %arg4: memref<1x40x128xf32, #tpu.memory_space<vmem>>) attributes {dimension_semantics = [#tpu.dimension_semantics<parallel>, #tpu.dimension_semantics<parallel>], iteration_bounds = array<i64: 2, 1>, scalar_prefetch = 0 : i64, scratch_operands = 0 : i64, tpu.core_type = #tpu.core_type<tc>, window_params = [{pipeline_mode = #tpu.pipeline_mode<synchronous>, transform_indices = @transform_0, window_bounds = array<i64: 1, 40, 80>}, {transform_indices = @transform_1, window_bounds = array<i64: 1, 80, 128>}, {transform_indices = @transform_2, window_bounds = array<i64: 1, 40, 128>}]} {
    %c0 = arith.constant 0 : index
    %c0_0 = arith.constant 0 : index
    %c0_1 = arith.constant 0 : index
    %0 = vector.load %arg2[%c0, %c0_0, %c0_1] : memref<1x40x80xf32, #tpu.memory_space<vmem>>, vector<1x40x80xf32>
    %c0_2 = arith.constant 0 : index
    %c0_3 = arith.constant 0 : index
    %c0_4 = arith.constant 0 : index
    %1 = vector.load %arg3[%c0_2, %c0_3, %c0_4] : memref<1x80x128xf32, #tpu.memory_space<vmem>>, vector<1x80x128xf32>
    "tpu.trace_start"() <{level = 10 : i32, message = "bkm,bmt->bkt"}> : () -> ()
    %cst = arith.constant dense<0.000000e+00> : vector<1x40x128xf32>
    %2 = tpu.matmul %0, %1, %cst {dimension_numbers = #tpu.dot_dimension_numbers<[2], [1], [1], [2], [0, 0, 0, 1, 1, 2], [0], [0]>} : vector<1x40x80xf32>, vector<1x80x128xf32>, vector<1x40x128xf32> -> vector<1x40x128xf32>
    "tpu.trace_stop"() : () -> ()
    %c0_5 = arith.constant 0 : index
    %c0_6 = arith.constant 0 : index
    %c0_7 = arith.constant 0 : index
    %3 = vector.load %arg4[%c0_5, %c0_6, %c0_7] : memref<1x40x128xf32, #tpu.memory_space<vmem>>, vector<1x40x128xf32>
    tpu.vector_store %arg4[%c0_5, %c0_6, %c0_7], %2 {strides = array<i32>} : memref<1x40x128xf32, #tpu.memory_space<vmem>>, vector<1x40x128xf32>,
    return
  }
  func.func @transform_0(%arg0: i32, %arg1: i32) -> (i32, i32, i32) {
    %c0_i32 = arith.constant 0 : i32
    %c0_i32_0 = arith.constant 0 : i32
    %c0_i32_1 = arith.constant 0 : i32
    %c0_i32_2 = arith.constant 0 : i32
    return %c0_i32, %c0_i32_0, %c0_i32_1 : i32, i32, i32
  }
  func.func @transform_1(%arg0: i32, %arg1: i32) -> (i32, i32, i32) {
    %c0_i32 = arith.constant 0 : i32
    %c0_i32_0 = arith.constant 0 : i32
    return %arg0, %c0_i32, %arg1 : i32, i32, i32
  }
  func.func @transform_2(%arg0: i32, %arg1: i32) -> (i32, i32, i32) {
    %c0_i32 = arith.constant 0 : i32
    %c0_i32_0 = arith.constant 0 : i32
    return %arg0, %c0_i32, %arg1 : i32, i32, i32
  }
}

</mosaic_0001>

<llo_original>
// kernel: tpu_custom_call.1
$region0: #{tpu_custom_call.1}
  #allocation0 [shape = 'u32[]', space=smem, size = 0x4, offset = 0x4, fixed_abs, tag = 'smem constant byte address 0x4 - core index']
  #allocation1 [shape = 'u32[72,128]{1,0:T(1,128)}', space=vmem, size = 0x9000, scoped, tag = 'internal scratch']
  %s0 = inlined_call_operand.hbm [shape: f32[1,40,80], index: 0, kind: input, shape index: {}]
  %s1 = inlined_call_operand.hbm [shape: f32[2,80,128], index: 1, kind: input, shape index: {}]
  %s2 = inlined_call_operand.hbm [shape: f32[2,40,128], index: 2, kind: output, shape index: {}]
  %s3 = sld [smem:[#allocation0]]
  $region49: #{tpu_custom_call.1} parent=0
    _
  %s5 = ssub.s32 1, %s3
  %s6 = scalar_select 0, %s5, %s3
  $region1: #{tpu_custom_call.1} parent=0
    #allocation2 [shape = 'u8[20480]{0}', space=vmem, size = 0x5000, scoped, tag = 'input window, operand 0, single buffered']
    #allocation3 [shape = 's32[2]{0}', space=sflag, size = 0x8, scoped, tag = 'scoped memory for tpu_custom_call.1']
    #allocation4 [shape = 's32[2]{0}', space=sflag, size = 0x8, scoped, tag = 'scoped memory for tpu_custom_call.1']
    #allocation5 [shape = 'u8[81920]{0}', space=vmem, size = 0x14000, scoped, tag = 'input window, operand 1']
    #allocation6 [shape = 's32[2]{0}', space=sflag, size = 0x8, scoped, tag = 'scoped memory for tpu_custom_call.1']
    #allocation7 [shape = 'u8[40960]{0}', space=vmem, size = 0xa000, scoped, tag = 'output window, operand 0']
    %7 = vsyncpa [#allocation3], 0
    %8 = vsyncpa [#allocation6], 0
    %s9 = scalar_lea.sflag [#allocation6], 1
    %10 = vsyncpa %s9, 0
    %11 = vsyncpa [#allocation4], 0
    %s12 = scalar_lea.sflag [#allocation4], 1
    %13 = vsyncpa %s12, 0
    loop: start=0, step=1, limit=4
    $region2: #{tpu_custom_call.1} parent=1 // loop_pre_header
      _
    $region3: #{tpu_custom_call.1} parent=1 // loop_header
      %s15 = sphi 0, %s19
      %p16 = scmp.ge.s32.totalorder %s15, 4
      %s22 = sphi 0, %s34
      %s23 = sphi 0, %s30
      %s24 = sphi 0, %s22
      %s25 = sphi 0, %s23
      %s26 = sphi 0, %s24
      %s27 = sphi 0, %s25
      %s35 = sphi 0, %s35
      %s37 = sphi 0, %s35
      %s38 = sphi 0, %s37
      %s52 = sphi 0, %s38
      %s60 = sphi 0, %s62
      %s63 = sphi 0, %s60
      %s64 = sphi 0, %s63
      %s80 = sphi 0, %s64
      %s88 = sphi 0, %s90
      %s91 = sphi 0, %s88
      %s92 = sphi 0, %s91
      %s108 = sphi 0, %s92
    $region4: #{tpu_custom_call.1} parent=1 // loop_header_branch
      %18 = sbr.rel (%p16) target = $region8
    $region5: #{tpu_custom_call.1} parent=1 // loop_body
      %s20 = ssub.s32 %s15, 1
      %s21 = ssub.s32 %s15, 2
      %s28 = sadd.s32 1, %s23
      %p29 = scmp.ge.s32.totalorder %s28, 1
      %s30 = scalar_select %p29, 0, %s28
      %s31 = sadd.s32 1, %s22
      %s32 = scalar_select %p29, %s31, %s22
      %p33 = scmp.ge.s32.totalorder %s32, 2
      %s34 = scalar_select %p33, 0, %s32
      %s36 = sadd.s32 %s35, 1
      %p39 = scmp.eq.s32.totalorder %s15, 1
      %p40 = scmp.ne.s32.totalorder %s35, %s37
      %p41 = scmp.eq.s32.totalorder %s15, 0
      %p42 = por %p40, %p41
      %p43 = scmp.ne.s32.totalorder %s35, %s37
      %p44 = scmp.eq.s32.totalorder %s20, 1
      %p45 = por %p43, %p44
      %p46 = scmp.ne.s32.totalorder %s37, %s38
      %p47 = scmp.eq.s32.totalorder %s20, 0
      %p48 = por %p46, %p47
      %p49 = scmp.ne.s32.totalorder %s37, %s38
      %p50 = scmp.eq.s32.totalorder %s21, 1
      %p51 = por %p49, %p50
      %p53 = scmp.ne.s32.totalorder %s38, %s52
      %p54 = scmp.eq.s32.totalorder %s21, 0
      %p55 = por %p53, %p54
      %s56 = ssub.s32 %s22, %s34
      %s57 = ssub.s32 %s23, %s30
      %s58 = sor.u32 %s56, %s57
      %p59 = scmp.eq.s32.totalorder %s58, 0
      %s61 = sadd.s32 %s60, 1
      %s62 = scalar_select %p59, %s60, %s61
      %p65 = pneg %p59
      %p66 = scmp.eq.s32.totalorder %s15, 1
      %p67 = por %p65, %p66
      %p68 = scmp.ne.s32.totalorder %s60, %s63
      %p69 = scmp.eq.s32.totalorder %s15, 0
      %p70 = por %p68, %p69
      %p71 = scmp.ne.s32.totalorder %s60, %s63
      %p72 = scmp.eq.s32.totalorder %s20, 1
      %p73 = por %p71, %p72
      %p74 = scmp.ne.s32.totalorder %s63, %s64
      %p75 = scmp.eq.s32.totalorder %s20, 0
      %p76 = por %p74, %p75
      %p77 = scmp.ne.s32.totalorder %s63, %s64
      %p78 = scmp.eq.s32.totalorder %s21, 1
      %p79 = por %p77, %p78
      %p81 = scmp.ne.s32.totalorder %s64, %s80
      %p82 = scmp.eq.s32.totalorder %s21, 0
      %p83 = por %p81, %p82
      %s84 = ssub.s32 %s22, %s34
      %s85 = ssub.s32 %s23, %s30
      %s86 = sor.u32 %s84, %s85
      %p87 = scmp.eq.s32.totalorder %s86, 0
      %s89 = sadd.s32 %s88, 1
      %s90 = scalar_select %p87, %s88, %s89
      %p93 = pneg %p87
      %p94 = scmp.eq.s32.totalorder %s15, 1
      %p95 = por %p93, %p94
      %p96 = scmp.ne.s32.totalorder %s88, %s91
      %p97 = scmp.eq.s32.totalorder %s15, 0
      %p98 = por %p96, %p97
      %p99 = scmp.ne.s32.totalorder %s88, %s91
      %p100 = scmp.eq.s32.totalorder %s20, 1
      %p101 = por %p99, %p100
      %p102 = scmp.ne.s32.totalorder %s91, %s92
      %p103 = scmp.eq.s32.totalorder %s20, 0
      %p104 = por %p102, %p103
      %p105 = scmp.ne.s32.totalorder %s91, %s92
      %p106 = scmp.eq.s32.totalorder %s21, 1
      %p107 = por %p105, %p106
      %p109 = scmp.ne.s32.totalorder %s92, %s108
      %p110 = scmp.eq.s32.totalorder %s21, 0
      %p111 = por %p109, %p110
      %p112 = scmp.le.s32.totalorder 1, %s15
      %p113 = scmp.lt.s32.totalorder %s15, 3
      %p114 = pnand %p112, %p113
      %p115 = pneg %p114
      // Predicated region
      $region9: #{tpu_custom_call.1} parent=5 // pred_check
        _
      $region10: #{tpu_custom_call.1} parent=5 // pred_check_branch
        %117 = sbr.rel (%p114) target = $region12
      $region11: #{tpu_custom_call.1} parent=5 // pred_region
        %s118 = ssub.s32 %s15, 1
        // Predicated region
        $region13: #{tpu_custom_call.1} parent=11 // pred_check
          %p119 = pneg %p48
        $region14: #{tpu_custom_call.1} parent=11 // pred_check_branch
          %121 = sbr.rel (%p119) target = $region16
        $region15: #{tpu_custom_call.1} parent=11 // pred_region
          %123 = vsyncadd [#allocation3], 0
          %s124 = sshll.u32 %s0, 4
          %s125 = int_to_ptr.hbm [resolvable:$true] %s124
          %s126 = sshll.u32 [#allocation2], 4
          %s127 = int_to_ptr.vmem [resolvable:$true] %s126
          %132 = dma.hbm_to_vmem [thread:$0]  %s125, 640, %s127, [#allocation3], 128, 128, 8
        $region16: #{tpu_custom_call.1} parent=11 // pred_fallthru
          _
      $region12: #{tpu_custom_call.1} parent=5 // pred_fallthru
        _
      %p133 = scmp.lt.s32.totalorder %s15, 2
      // Predicated region
      $region17: #{tpu_custom_call.1} parent=5 // pred_check
        %p134 = pneg %p133
      $region18: #{tpu_custom_call.1} parent=5 // pred_check_branch
        %136 = sbr.rel (%p134) target = $region20
      $region19: #{tpu_custom_call.1} parent=5 // pred_region
        // Predicated region
        $region21: #{tpu_custom_call.1} parent=19 // pred_check
          %p137 = pneg %p70
        $region22: #{tpu_custom_call.1} parent=19 // pred_check_branch
          %139 = sbr.rel (%p137) target = $region24
        $region23: #{tpu_custom_call.1} parent=19 // pred_region
          %s140 = sand.u32 %s60, 1
          %s141 = scalar_lea.sflag [#allocation6], %s140
          %s142 = sand.u32 %s60, 1
          %s143 = smul.addr %s142, 80
          %s144 = scalar_lea.vmem [#allocation5], %s143
          %146 = vsyncadd %s141, 0
          %s147 = smul.addr %s22, 10
          %s148 = sadd.s32 %s23, %s147
          %s149 = smul.addr %s148, 8
          %s150 = scalar_lea.hbm %s1, %s149
          %s151 = sshll.u32 %s150, 4
          %s152 = int_to_ptr.hbm [resolvable:$true] %s151
          %s153 = sshll.u32 %s144, 4
          %s154 = int_to_ptr.vmem [resolvable:$true] %s153
          %159 = dma.hbm_to_vmem [thread:$0]  %s152, 1280, %s154, %s141, 128, 128, 8
        $region24: #{tpu_custom_call.1} parent=19 // pred_fallthru
          _
      $region20: #{tpu_custom_call.1} parent=5 // pred_fallthru
        _
      %p160 = scmp.le.s32.totalorder 1, %s15
      %p161 = scmp.lt.s32.totalorder %s15, 3
      %p162 = pnand %p160, %p161
      %p163 = pneg %p162
      // Predicated region
      $region25: #{tpu_custom_call.1} parent=5 // pred_check
        _
      $region26: #{tpu_custom_call.1} parent=5 // pred_check_branch
        %165 = sbr.rel (%p162) target = $region28
      $region27: #{tpu_custom_call.1} parent=5 // pred_region
        %s166 = ssub.s32 %s15, 1
        // Predicated region
        $region29: #{tpu_custom_call.1} parent=27 // pred_check
          %p167 = pneg %p48
        $region30: #{tpu_custom_call.1} parent=27 // pred_check_branch
          %169 = sbr.rel (%p167) target = $region32
        $region31: #{tpu_custom_call.1} parent=27 // pred_region
          %171 = dma.done [#allocation3], 640
        $region32: #{tpu_custom_call.1} parent=27 // pred_fallthru
          _
        %s172 = sand.u32 %s63, 1
        %s173 = scalar_lea.sflag [#allocation6], %s172
        %s174 = sand.u32 %s63, 1
        %s175 = smul.addr %s174, 80
        %s176 = scalar_lea.vmem [#allocation5], %s175
        // Predicated region
        $region33: #{tpu_custom_call.1} parent=27 // pred_check
          %p177 = pneg %p76
        $region34: #{tpu_custom_call.1} parent=27 // pred_check_branch
          %179 = sbr.rel (%p177) target = $region36
        $region35: #{tpu_custom_call.1} parent=27 // pred_region
          %181 = dma.done %s173, 1280
        $region36: #{tpu_custom_call.1} parent=27 // pred_fallthru
          _
        %p182 = pneg %p48
        %p183 = pneg %p45
        %s184 = sand.u32 %s63, 1
        %s185 = scalar_lea.sflag [#allocation6], %s184
        %s186 = sand.u32 %s63, 1
        %s187 = smul.addr %s186, 80
        %s188 = scalar_lea.vmem [#allocation5], %s187
        %p189 = pneg %p76
        %p190 = pneg %p73
        %p191 = pneg %p104
        %p192 = pneg %p101
        %s193 = sand.u32 %s91, 1
        %s194 = scalar_lea.sflag [#allocation4], %s193
        %s195 = sand.u32 %s91, 1
        %s196 = smul.addr %s195, 40
        %s197 = scalar_lea.vmem [#allocation7], %s196
        %v198 = vld [vmem:[#allocation2] sm:$0xff]
        %v199 = vld [vmem:[#allocation2 + $0x8] sm:$0xff]
        %v200 = vld [vmem:[#allocation2 + $0x10] sm:$0xff]
        %v201 = vld [vmem:[#allocation2 + $0x18] sm:$0xff]
        %v202 = vld [vmem:[#allocation2 + $0x20] sm:$0xff]
        %v203 = vld [vmem:[%s176] sm:$0xff]
        %v204 = vld [vmem:[%s176 + $0x8] sm:$0xff]
        %v205 = vld [vmem:[%s176 + $0x10] sm:$0xff]
        %v206 = vld [vmem:[%s176 + $0x18] sm:$0xff]
        %v207 = vld [vmem:[%s176 + $0x20] sm:$0xff]
        %v208 = vld [vmem:[%s176 + $0x28] sm:$0xff]
        %v209 = vld [vmem:[%s176 + $0x30] sm:$0xff]
        %v210 = vld [vmem:[%s176 + $0x38] sm:$0xff]
        %v211 = vld [vmem:[%s176 + $0x40] sm:$0xff]
        %v212 = vld [vmem:[%s176 + $0x48] sm:$0xff]
        %vm213 = vcmask 654336
        %v215 = vsel %vm213, %v198, 0
        %v218 = vsel %vm213, %v199, 0
        %v221 = vsel %vm213, %v200, 0
        %v224 = vsel %vm213, %v201, 0
        %v227 = vsel %vm213, %v202, 0
        %229 = vmatpush.msra.mxu0 0.0
        %230 = vmatpush.msra.mxu0 0.0
        %231 = vmatpush.msra.mxu0 0.0
        %232 = vmatpush.msra.mxu0 0.0
        %233 = vmatpush.msra.mxu0 0.0
        %234 = vmatpush.msra.mxu0 0.0
        %235 = vmatpush.msra.mxu0 %v212
        %236 = vmatpush.msra.mxu0 %v211
        %237 = vmatpush.msra.mxu0 %v210
        %238 = vmatpush.msra.mxu0 %v209
        %239 = vmatpush.msra.mxu0 %v208
        %240 = vmatpush.msra.mxu0 %v207
        %241 = vmatpush.msra.mxu0 %v206
        %242 = vmatpush.msra.mxu0 %v205
        %243 = vmatpush.msra.mxu0 %v204
        %244 = vmatpush.msra.mxu0 %v203
        %245 = vmatmul.f32.gmra.mxu0 %v215
        %v246 = vpop.f32.mrf.mxu0
        %v247 = vadd.f32 0.0, %v246
        %248 = vmatmul.f32.gmra.mxu0 %v218
        %v249 = vpop.f32.mrf.mxu0
        %v250 = vadd.f32 0.0, %v249
        %251 = vmatmul.f32.gmra.mxu0 %v221
        %v252 = vpop.f32.mrf.mxu0
        %v253 = vadd.f32 0.0, %v252
        %254 = vmatmul.f32.gmra.mxu0 %v224
        %v255 = vpop.f32.mrf.mxu0
        %v256 = vadd.f32 0.0, %v255
        %257 = vmatmul.f32.gmra.mxu0 %v227
        %v258 = vpop.f32.mrf.mxu0
        %v259 = vadd.f32 0.0, %v258
        %260 = vdwg.mxu0
        %261 = vst [vmem:[%s197] sm:$0xff] %v247
        %262 = vst [vmem:[%s197 + $0x8] sm:$0xff] %v250
        %263 = vst [vmem:[%s197 + $0x10] sm:$0xff] %v253
        %264 = vst [vmem:[%s197 + $0x18] sm:$0xff] %v256
        %265 = vst [vmem:[%s197 + $0x20] sm:$0xff] %v259
        %s266 = sand.u32 %s91, 1
        %s267 = scalar_lea.sflag [#allocation4], %s266
        %s268 = sand.u32 %s91, 1
        %s269 = smul.addr %s268, 40
        %s270 = scalar_lea.vmem [#allocation7], %s269
        // Predicated region
        $region37: #{tpu_custom_call.1} parent=27 // pred_check
          %p271 = pneg %p101
        $region38: #{tpu_custom_call.1} parent=27 // pred_check_branch
          %273 = sbr.rel (%p271) target = $region40
        $region39: #{tpu_custom_call.1} parent=27 // pred_region
          %275 = vsyncadd %s267, 0
          %s276 = smul.addr %s24, 5
          %s277 = sadd.s32 %s25, %s276
          %s278 = smul.addr %s277, 8
          %s279 = scalar_lea.hbm %s2, %s278
          %s280 = sshll.u32 %s270, 4
          %s281 = int_to_ptr.vmem [resolvable:$true] %s280
          %s282 = sshll.u32 %s279, 4
          %s283 = int_to_ptr.hbm [resolvable:$true] %s282
          %288 = dma.vmem_to_hbm [thread:$0]  %s281, 640, %s283, %s267, 128, 128, 8
        $region40: #{tpu_custom_call.1} parent=27 // pred_fallthru
          _
      $region28: #{tpu_custom_call.1} parent=5 // pred_fallthru
        _
      %p289 = scmp.le.s32.totalorder 2, %s15
      // Predicated region
      $region41: #{tpu_custom_call.1} parent=5 // pred_check
        %p290 = pneg %p289
      $region42: #{tpu_custom_call.1} parent=5 // pred_check_branch
        %292 = sbr.rel (%p290) target = $region44
      $region43: #{tpu_custom_call.1} parent=5 // pred_region
        %s293 = ssub.s32 %s15, 2
        // Predicated region
        $region45: #{tpu_custom_call.1} parent=43 // pred_check
          %p294 = pneg %p107
        $region46: #{tpu_custom_call.1} parent=43 // pred_check_branch
          %296 = sbr.rel (%p294) target = $region48
        $region47: #{tpu_custom_call.1} parent=43 // pred_region
          %s297 = sand.u32 %s92, 1
          %s298 = scalar_lea.sflag [#allocation4], %s297
          %s299 = sand.u32 %s92, 1
          %s300 = smul.addr %s299, 40
          %s301 = scalar_lea.vmem [#allocation7], %s300
          %303 = dma.done %s298, 640
        $region48: #{tpu_custom_call.1} parent=43 // pred_fallthru
          _
      $region44: #{tpu_custom_call.1} parent=5 // pred_fallthru
        _
    $region6: #{tpu_custom_call.1} parent=1 // loop_footer
      %s19 = sadd.s32 1, %s15
    $region7: #{tpu_custom_call.1} parent=1 // loop_footer_branch
      %14 = sbr.rel target = $region3
    $region8: #{tpu_custom_call.1} parent=1 // loop_exit
      _
    %304 = vsyncpa [#allocation3], 1
    %s305 = scalar_lea.sflag [#allocation3], 1
    %306 = vsyncpa %s305, 1
    %307 = vsyncpa [#allocation6], 1
    %s308 = scalar_lea.sflag [#allocation6], 1
    %309 = vsyncpa %s308, 1
    %310 = vsyncpa [#allocation4], 1
    %s311 = scalar_lea.sflag [#allocation4], 1
    %312 = vsyncpa %s311, 1

</llo_original>
